<compile_context>
chip_gen: v7x
topology: tpu7x:2x2x1
jax: 0.10.0
libtpu: 0.0.40
codegen_flags: <defaults>
</compile_context>

<pallas_src>
import functools
import math

import jax
import jax.numpy as jnp
from jax import lax
from jax.experimental import pallas as pl
from jax.experimental.pallas import tpu as pltpu

_LANE = 128
_MAX_TB = 16384                     # batch-tile upper bound (multiple of 128)
_LOG_LO = math.log(1e-7)            # log(clamp min)
_LOG_HI = math.log(1.0 - 1e-7)      # log(clamp max)


def _log_sigmoid(x):
    # log(sigmoid(x)) = -softplus(-x) = min(x, 0) - log1p(exp(-|x|))
    return jnp.minimum(x, 0.0) - jnp.log1p(jnp.exp(-jnp.abs(x)))


def _combined_loss_kernel(logits_ref, target_ref, out_ref, *,
                          true_b, neg_margin, neg_weight,
                          weight_ranking, weight_bce, reduction):
    logits = logits_ref[...].astype(jnp.float32)   # (C, SB, 128)  class x slab
    target = target_ref[...].astype(jnp.float32)   # (C, SB, 128)
    C = logits.shape[0]
    pos_num = C - 1
    inv_pos = 1.0 / pos_num

    # ---- labels = argmax over class axis (unrolled; strict > keeps first max) ----
    max_v = target[0]                               # (SB, 128)
    lbl_f = jnp.zeros_like(max_v)                   # float label index per sample
    for j in range(1, C):
        row = target[j]
        is_new = row > max_v
        max_v = jnp.where(is_new, row, max_v)
        lbl_f = jnp.where(is_new, float(j), lbl_f)
    is_neg = lbl_f == 0.0

    # ---- log-sigmoid identities (2 EUP ops/elem) with clamp(pred) semantics ----
    log_p_raw = _log_sigmoid(logits)                           # log(sigmoid(x))
    log_p = jnp.clip(log_p_raw, _LOG_LO, _LOG_HI)              # log(clamp(sigmoid(x)))
    log_1mp = jnp.clip(log_p_raw - logits, _LOG_LO, _LOG_HI)   # log(1 - clamp(sigmoid(x)))

    # ---- gathers at the label row (unrolled per-lane selects, pure VPU) ----
    x1 = jnp.zeros_like(lbl_f)        # logits[i, label]
    t_lab = jnp.zeros_like(lbl_f)     # target[i, label]
    for j in range(C):
        sel = lbl_f == float(j)
        x1 = jnp.where(sel, logits[j], x1)
        t_lab = jnp.where(sel, target[j], t_lab)
    # derive log(pred[i, label]) from the gathered x1 (saves a third select chain)
    lp_lab = jnp.clip(_log_sigmoid(x1), _LOG_LO, _LOG_HI)

    # ---- RankingLoss (unrolled over positive classes) ----
    pair_sum = jnp.zeros_like(lbl_f)
    for j in range(1, C):
        margin_j = jnp.abs(lbl_f - float(j)) * inv_pos
        pair_sum = pair_sum + jnp.maximum(logits[j] - x1 + margin_j, 0.0)
    neg_term = neg_margin * jnp.maximum(logits[0] - x1 + 1.0, 0.0)
    ranking = jnp.where(is_neg, 0.0, pair_sum + neg_term)        # (SB, 128)

    # ---- MySoftBCELoss ----
    soft = target * log_p + (1.0 - target) * log_1mp             # (C, SB, 128)
    soft_sum = soft[0]
    for j in range(1, C):                                        # unrolled VPU adds
        soft_sum = soft_sum + soft[j]
    bce_neg_branch = soft_sum * (1.0 / C)
    bce_pos_branch = t_lab * lp_lab + neg_weight * log_1mp[0]
    bce = -jnp.where(is_neg, bce_neg_branch, bce_pos_branch)     # (SB, 128)

    combined = weight_ranking * ranking + weight_bce * bce       # (SB, 128)

    if reduction == "none":
        out_ref[...] = combined                                  # dense vreg stores
    else:
        # per-tile partial sum; padded batch lanes masked out
        i = pl.program_id(0)
        tb = combined.shape[0] * _LANE
        sub = lax.broadcasted_iota(jnp.int32, combined.shape, 0)
        lane = lax.broadcasted_iota(jnp.int32, combined.shape, 1)
        col = i * tb + sub * _LANE + lane
        masked = jnp.where(col < true_b, combined, 0.0)
        out_ref[0, 0] = jnp.sum(masked)


def ranking_and_soft_bce_loss(logits, target, *, reduction="mean",
                              neg_weight=1.0, weight_ranking=1.0,
                              weight_bce=1.0, neg_margin=0.0):
    """logits, target: (B, C). Returns scalar (mean/sum) or (B,) f32 (none)."""
    B, C = logits.shape

    # pad batch to a lane multiple and pick a batch tile (multiple of 128)
    padded_b = -(-B // _LANE) * _LANE
    tb = min(padded_b, _MAX_TB)
    padded_b = -(-padded_b // tb) * tb
    num_tiles = padded_b // tb
    sb = tb // _LANE                                   # sublane-blocks per tile

    pad = padded_b - B
    if pad:
        logits_p = jnp.pad(logits, ((0, pad), (0, 0)))
        target_p = jnp.pad(target, ((0, pad), (0, 0)))
    else:
        logits_p, target_p = logits, target
    # batch on lanes, class on the leading axis; dense (sublane x lane) slab per class.
    # TODO(synk): if the producer can emit (C, padded_b) directly, this copy goes away.
    logits_t = logits_p.T.reshape(C, padded_b // _LANE, _LANE)
    target_t = target_p.T.reshape(C, padded_b // _LANE, _LANE)

    kernel = functools.partial(
        _combined_loss_kernel,
        true_b=B,
        neg_margin=float(neg_margin),
        neg_weight=float(neg_weight),
        weight_ranking=float(weight_ranking),
        weight_bce=float(weight_bce),
        reduction=reduction,
    )

    in_specs = [
        pl.BlockSpec((C, sb, _LANE), lambda i: (0, i, 0)),
        pl.BlockSpec((C, sb, _LANE), lambda i: (0, i, 0)),
    ]

    if reduction == "none":
        out_shape = jax.ShapeDtypeStruct((padded_b // _LANE, _LANE), jnp.float32)
        out_spec = pl.BlockSpec((sb, _LANE), lambda i: (i, 0))
    else:
        # per-tile partial sums; final (tiny) reduction happens in the wrapper so
        # the grid can stay fully parallel (megacore-friendly on v7x).
        out_shape = jax.ShapeDtypeStruct((1, num_tiles), jnp.float32)
        out_spec = pl.BlockSpec((1, 1), lambda i: (0, i), memory_space=pltpu.SMEM)

    out = pl.pallas_call(
        kernel,
        grid=(num_tiles,),
        in_specs=in_specs,
        out_specs=out_spec,
        out_shape=out_shape,
        compiler_params=pltpu.CompilerParams(dimension_semantics=("parallel",)),
    )(logits_t, target_t)

    if reduction == "none":
        return out.reshape(padded_b)[:B]
    total = jnp.sum(out)
    if reduction == "mean":
        total = total / B                                # true B, not padded
    return total


def _reference(logits, target, reduction="mean", neg_weight=1.0,
               weight_ranking=1.0, weight_bce=1.0, neg_margin=0.0):
    """Pure-JAX reference matching the PyTorch RankingAndSoftBCELoss."""
    B, C = logits.shape
    pos_num = C - 1
    labels = jnp.argmax(target, axis=1)
    # RankingLoss
    x1 = jnp.take_along_axis(logits, labels[:, None], axis=1)          # (B,1)
    j = jnp.arange(C)[None, :]
    margins = jnp.abs(labels[:, None] - j).astype(jnp.float32) / pos_num
    per = jnp.maximum(logits - x1 + margins, 0.0)
    pair = jnp.sum(jnp.where(j >= 1, per, 0.0), axis=1)
    negt = neg_margin * jnp.maximum(logits[:, 0] - x1[:, 0] + 1.0, 0.0)
    rank = jnp.where(labels == 0, 0.0, pair + negt)
    # MySoftBCELoss
    pred = jnp.clip(jax.nn.sigmoid(logits), 1e-7, 1.0 - 1e-7)
    soft = target * jnp.log(pred) + (1.0 - target) * jnp.log(1.0 - pred)
    bce0 = jnp.mean(soft, axis=1)
    t_lab = jnp.take_along_axis(target, labels[:, None], axis=1)[:, 0]
    p_lab = jnp.take_along_axis(pred, labels[:, None], axis=1)[:, 0]
    bce1 = t_lab * jnp.log(p_lab) + neg_weight * jnp.log(1.0 - pred[:, 0])
    bce = -jnp.where(labels == 0, bce0, bce1)
    out = weight_ranking * rank + weight_bce * bce
    if reduction == "mean":
        return jnp.mean(out)
    if reduction == "sum":
        return jnp.sum(out)
    return out


if __name__ == "__main__":
    key = jax.random.PRNGKey(0)
    B, C = 8, 5                         # batch=8, 1 negative class + 4 positives
    k1, k2 = jax.random.split(key)
    logits = jax.random.normal(k1, (B, C), dtype=jnp.float32)
    labels = jax.random.randint(k2, (B,), 0, C)          # includes label==0 cases
    # soft targets (argmax still well-defined) to exercise the soft-BCE branch
    target = jax.nn.one_hot(labels, C, dtype=jnp.float32) * 0.9 + 0.02

    kwargs = dict(neg_weight=1.5, weight_ranking=0.7, weight_bce=1.3, neg_margin=0.5)

    ok = True
    for red in ("mean", "sum", "none"):
        got = ranking_and_soft_bce_loss(logits, target, reduction=red, **kwargs)
        got = jax.block_until_ready(got)
        ref = _reference(logits, target, reduction=red, **kwargs)
        if not jnp.allclose(got, ref, atol=1e-5, rtol=1e-5):
            ok = False
            print(f"MISMATCH ({red}):", got, ref)

    if ok:
        print("KERNEL_OK")
</pallas_src>

<mosaic_0001>
module attributes {stable_mosaic.version = 11 : i64} {
  func.func @_combined_loss_kernel(%arg0: i32, %arg1: memref<5x1x128xf32, #tpu.memory_space<vmem>>, %arg2: memref<5x1x128xf32, #tpu.memory_space<vmem>>, %arg3: memref<1x1xf32, #tpu.memory_space<smem>>) attributes {dimension_semantics = [#tpu.dimension_semantics<parallel>], iteration_bounds = array<i64: 1>, scalar_prefetch = 0 : i64, scratch_operands = 0 : i64, tpu.core_type = #tpu.core_type<tc>, window_params = [{transform_indices = @transform_0, window_bounds = array<i64: 5, 1, 128>}, {transform_indices = @transform_1, window_bounds = array<i64: 5, 1, 128>}, {transform_indices = @transform_2, window_bounds = array<i64: 1, 1>}]} {
    %c0 = arith.constant 0 : index
    %c0_0 = arith.constant 0 : index
    %c0_1 = arith.constant 0 : index
    %0 = vector.load %arg1[%c0, %c0_0, %c0_1] : memref<5x1x128xf32, #tpu.memory_space<vmem>>, vector<5x1x128xf32>
    %c0_2 = arith.constant 0 : index
    %c0_3 = arith.constant 0 : index
    %c0_4 = arith.constant 0 : index
    %1 = vector.load %arg2[%c0_2, %c0_3, %c0_4] : memref<5x1x128xf32, #tpu.memory_space<vmem>>, vector<5x1x128xf32>
    %2 = vector.extract_strided_slice %1 {offsets = [0, 0, 0], sizes = [1, 1, 128], strides = [1, 1, 1]} : vector<5x1x128xf32> to vector<1x1x128xf32>
    %3 = vector.shape_cast %2 : vector<1x1x128xf32> to vector<1x128xf32>
    %cst = arith.constant 0.000000e+00 : f32
    %4 = vector.broadcast %cst : f32 to vector<1x128xf32>
    %5 = vector.extract_strided_slice %1 {offsets = [1, 0, 0], sizes = [1, 1, 128], strides = [1, 1, 1]} : vector<5x1x128xf32> to vector<1x1x128xf32>
    %6 = vector.shape_cast %5 : vector<1x1x128xf32> to vector<1x128xf32>
    %7 = arith.cmpf ogt, %6, %3 : vector<1x128xf32>
    %8 = arith.select %7, %6, %3 : vector<1x128xi1>, vector<1x128xf32>
    %cst_5 = arith.constant 1.000000e+00 : f32
    %9 = vector.broadcast %cst_5 : f32 to vector<1x128xf32>
    %10 = arith.select %7, %9, %4 : vector<1x128xi1>, vector<1x128xf32>
    %11 = vector.extract_strided_slice %1 {offsets = [2, 0, 0], sizes = [1, 1, 128], strides = [1, 1, 1]} : vector<5x1x128xf32> to vector<1x1x128xf32>
    %12 = vector.shape_cast %11 : vector<1x1x128xf32> to vector<1x128xf32>
    %13 = arith.cmpf ogt, %12, %8 : vector<1x128xf32>
    %14 = arith.select %13, %12, %8 : vector<1x128xi1>, vector<1x128xf32>
    %cst_6 = arith.constant 2.000000e+00 : f32
    %15 = vector.broadcast %cst_6 : f32 to vector<1x128xf32>
    %16 = arith.select %13, %15, %10 : vector<1x128xi1>, vector<1x128xf32>
    %17 = vector.extract_strided_slice %1 {offsets = [3, 0, 0], sizes = [1, 1, 128], strides = [1, 1, 1]} : vector<5x1x128xf32> to vector<1x1x128xf32>
    %18 = vector.shape_cast %17 : vector<1x1x128xf32> to vector<1x128xf32>
    %19 = arith.cmpf ogt, %18, %14 : vector<1x128xf32>
    %20 = arith.select %19, %18, %14 : vector<1x128xi1>, vector<1x128xf32>
    %cst_7 = arith.constant 3.000000e+00 : f32
    %21 = vector.broadcast %cst_7 : f32 to vector<1x128xf32>
    %22 = arith.select %19, %21, %16 : vector<1x128xi1>, vector<1x128xf32>
    %23 = vector.extract_strided_slice %1 {offsets = [4, 0, 0], sizes = [1, 1, 128], strides = [1, 1, 1]} : vector<5x1x128xf32> to vector<1x1x128xf32>
    %24 = vector.shape_cast %23 : vector<1x1x128xf32> to vector<1x128xf32>
    %25 = arith.cmpf ogt, %24, %20 : vector<1x128xf32>
    %cst_8 = arith.constant 4.000000e+00 : f32
    %26 = vector.broadcast %cst_8 : f32 to vector<1x128xf32>
    %27 = arith.select %25, %26, %22 : vector<1x128xi1>, vector<1x128xf32>
    %cst_9 = arith.constant 0.000000e+00 : f32
    %28 = vector.broadcast %cst_9 : f32 to vector<1x128xf32>
    %29 = arith.cmpf oeq, %27, %28 : vector<1x128xf32>
    %cst_10 = arith.constant 0.000000e+00 : f32
    %30 = vector.broadcast %cst_10 : f32 to vector<5x1x128xf32>
    %31 = arith.minimumf %0, %30 : vector<5x1x128xf32>
    %32 = math.absf %0 : vector<5x1x128xf32>
    %cst_11 = arith.constant 0.000000e+00 : f32
    %33 = vector.broadcast %cst_11 : f32 to vector<5x1x128xf32>
    %34 = arith.subf %33, %32 : vector<5x1x128xf32>
    %35 = math.exp %34 : vector<5x1x128xf32>
    %36 = math.log1p %35 : vector<5x1x128xf32>
    %37 = arith.subf %31, %36 : vector<5x1x128xf32>
    %cst_12 = arith.constant -16.1180954 : f32
    %cst_13 = arith.constant -1.00000008E-7 : f32
    %38 = vector.broadcast %cst_12 : f32 to vector<5x1x128xf32>
    %39 = arith.maximumf %38, %37 : vector<5x1x128xf32>
    %40 = vector.broadcast %cst_13 : f32 to vector<5x1x128xf32>
    %41 = arith.minimumf %40, %39 : vector<5x1x128xf32>
    %42 = arith.subf %37, %0 : vector<5x1x128xf32>
    %cst_14 = arith.constant -16.1180954 : f32
    %cst_15 = arith.constant -1.00000008E-7 : f32
    %43 = vector.broadcast %cst_14 : f32 to vector<5x1x128xf32>
    %44 = arith.maximumf %43, %42 : vector<5x1x128xf32>
    %45 = vector.broadcast %cst_15 : f32 to vector<5x1x128xf32>
    %46 = arith.minimumf %45, %44 : vector<5x1x128xf32>
    %cst_16 = arith.constant 0.000000e+00 : f32
    %47 = vector.broadcast %cst_16 : f32 to vector<1x128xf32>
    %cst_17 = arith.constant 0.000000e+00 : f32
    %48 = vector.broadcast %cst_17 : f32 to vector<1x128xf32>
    %cst_18 = arith.constant 0.000000e+00 : f32
    %49 = vector.broadcast %cst_18 : f32 to vector<1x128xf32>
    %50 = arith.cmpf oeq, %27, %49 : vector<1x128xf32>
    %51 = vector.extract_strided_slice %0 {offsets = [0, 0, 0], sizes = [1, 1, 128], strides = [1, 1, 1]} : vector<5x1x128xf32> to vector<1x1x128xf32>
    %52 = vector.shape_cast %51 : vector<1x1x128xf32> to vector<1x128xf32>
    %53 = arith.select %50, %52, %47 : vector<1x128xi1>, vector<1x128xf32>
    %54 = vector.extract_strided_slice %1 {offsets = [0, 0, 0], sizes = [1, 1, 128], strides = [1, 1, 1]} : vector<5x1x128xf32> to vector<1x1x128xf32>
    %55 = vector.shape_cast %54 : vector<1x1x128xf32> to vector<1x128xf32>
    %56 = arith.select %50, %55, %48 : vector<1x128xi1>, vector<1x128xf32>
    %cst_19 = arith.constant 1.000000e+00 : f32
    %57 = vector.broadcast %cst_19 : f32 to vector<1x128xf32>
    %58 = arith.cmpf oeq, %27, %57 : vector<1x128xf32>
    %59 = vector.extract_strided_slice %0 {offsets = [1, 0, 0], sizes = [1, 1, 128], strides = [1, 1, 1]} : vector<5x1x128xf32> to vector<1x1x128xf32>
    %60 = vector.shape_cast %59 : vector<1x1x128xf32> to vector<1x128xf32>
    %61 = arith.select %58, %60, %53 : vector<1x128xi1>, vector<1x128xf32>
    %62 = vector.extract_strided_slice %1 {offsets = [1, 0, 0], sizes = [1, 1, 128], strides = [1, 1, 1]} : vector<5x1x128xf32> to vector<1x1x128xf32>
    %63 = vector.shape_cast %62 : vector<1x1x128xf32> to vector<1x128xf32>
    %64 = arith.select %58, %63, %56 : vector<1x128xi1>, vector<1x128xf32>
    %cst_20 = arith.constant 2.000000e+00 : f32
    %65 = vector.broadcast %cst_20 : f32 to vector<1x128xf32>
    %66 = arith.cmpf oeq, %27, %65 : vector<1x128xf32>
    %67 = vector.extract_strided_slice %0 {offsets = [2, 0, 0], sizes = [1, 1, 128], strides = [1, 1, 1]} : vector<5x1x128xf32> to vector<1x1x128xf32>
    %68 = vector.shape_cast %67 : vector<1x1x128xf32> to vector<1x128xf32>
    %69 = arith.select %66, %68, %61 : vector<1x128xi1>, vector<1x128xf32>
    %70 = vector.extract_strided_slice %1 {offsets = [2, 0, 0], sizes = [1, 1, 128], strides = [1, 1, 1]} : vector<5x1x128xf32> to vector<1x1x128xf32>
    %71 = vector.shape_cast %70 : vector<1x1x128xf32> to vector<1x128xf32>
    %72 = arith.select %66, %71, %64 : vector<1x128xi1>, vector<1x128xf32>
    %cst_21 = arith.constant 3.000000e+00 : f32
    %73 = vector.broadcast %cst_21 : f32 to vector<1x128xf32>
    %74 = arith.cmpf oeq, %27, %73 : vector<1x128xf32>
    %75 = vector.extract_strided_slice %0 {offsets = [3, 0, 0], sizes = [1, 1, 128], strides = [1, 1, 1]} : vector<5x1x128xf32> to vector<1x1x128xf32>
    %76 = vector.shape_cast %75 : vector<1x1x128xf32> to vector<1x128xf32>
    %77 = arith.select %74, %76, %69 : vector<1x128xi1>, vector<1x128xf32>
    %78 = vector.extract_strided_slice %1 {offsets = [3, 0, 0], sizes = [1, 1, 128], strides = [1, 1, 1]} : vector<5x1x128xf32> to vector<1x1x128xf32>
    %79 = vector.shape_cast %78 : vector<1x1x128xf32> to vector<1x128xf32>
    %80 = arith.select %74, %79, %72 : vector<1x128xi1>, vector<1x128xf32>
    %cst_22 = arith.constant 4.000000e+00 : f32
    %81 = vector.broadcast %cst_22 : f32 to vector<1x128xf32>
    %82 = arith.cmpf oeq, %27, %81 : vector<1x128xf32>
    %83 = vector.extract_strided_slice %0 {offsets = [4, 0, 0], sizes = [1, 1, 128], strides = [1, 1, 1]} : vector<5x1x128xf32> to vector<1x1x128xf32>
    %84 = vector.shape_cast %83 : vector<1x1x128xf32> to vector<1x128xf32>
    %85 = arith.select %82, %84, %77 : vector<1x128xi1>, vector<1x128xf32>
    %86 = vector.extract_strided_slice %1 {offsets = [4, 0, 0], sizes = [1, 1, 128], strides = [1, 1, 1]} : vector<5x1x128xf32> to vector<1x1x128xf32>
    %87 = vector.shape_cast %86 : vector<1x1x128xf32> to vector<1x128xf32>
    %88 = arith.select %82, %87, %80 : vector<1x128xi1>, vector<1x128xf32>
    %cst_23 = arith.constant 0.000000e+00 : f32
    %89 = vector.broadcast %cst_23 : f32 to vector<1x128xf32>
    %90 = arith.minimumf %85, %89 : vector<1x128xf32>
    %91 = math.absf %85 : vector<1x128xf32>
    %cst_24 = arith.constant 0.000000e+00 : f32
    %92 = vector.broadcast %cst_24 : f32 to vector<1x128xf32>
    %93 = arith.subf %92, %91 : vector<1x128xf32>
    %94 = math.exp %93 : vector<1x128xf32>
    %95 = math.log1p %94 : vector<1x128xf32>
    %96 = arith.subf %90, %95 : vector<1x128xf32>
    %cst_25 = arith.constant -16.1180954 : f32
    %cst_26 = arith.constant -1.00000008E-7 : f32
    %97 = vector.broadcast %cst_25 : f32 to vector<1x128xf32>
    %98 = arith.maximumf %97, %96 : vector<1x128xf32>
    %99 = vector.broadcast %cst_26 : f32 to vector<1x128xf32>
    %100 = arith.minimumf %99, %98 : vector<1x128xf32>
    %cst_27 = arith.constant 0.000000e+00 : f32
    %101 = vector.broadcast %cst_27 : f32 to vector<1x128xf32>
    %cst_28 = arith.constant 1.000000e+00 : f32
    %102 = vector.broadcast %cst_28 : f32 to vector<1x128xf32>
    %103 = arith.subf %27, %102 : vector<1x128xf32>
    %104 = math.absf %103 : vector<1x128xf32>
    %cst_29 = arith.constant 2.500000e-01 : f32
    %105 = vector.broadcast %cst_29 : f32 to vector<1x128xf32>
    %106 = arith.mulf %104, %105 : vector<1x128xf32>
    %107 = vector.extract_strided_slice %0 {offsets = [1, 0, 0], sizes = [1, 1, 128], strides = [1, 1, 1]} : vector<5x1x128xf32> to vector<1x1x128xf32>
    %108 = vector.shape_cast %107 : vector<1x1x128xf32> to vector<1x128xf32>
    %109 = arith.subf %108, %85 : vector<1x128xf32>
    %110 = arith.addf %109, %106 : vector<1x128xf32>
    %cst_30 = arith.constant 0.000000e+00 : f32
    %111 = vector.broadcast %cst_30 : f32 to vector<1x128xf32>
    %112 = arith.maximumf %110, %111 : vector<1x128xf32>
    %113 = arith.addf %101, %112 : vector<1x128xf32>
    %cst_31 = arith.constant 2.000000e+00 : f32
    %114 = vector.broadcast %cst_31 : f32 to vector<1x128xf32>
    %115 = arith.subf %27, %114 : vector<1x128xf32>
    %116 = math.absf %115 : vector<1x128xf32>
    %cst_32 = arith.constant 2.500000e-01 : f32
    %117 = vector.broadcast %cst_32 : f32 to vector<1x128xf32>
    %118 = arith.mulf %116, %117 : vector<1x128xf32>
    %119 = vector.extract_strided_slice %0 {offsets = [2, 0, 0], sizes = [1, 1, 128], strides = [1, 1, 1]} : vector<5x1x128xf32> to vector<1x1x128xf32>
    %120 = vector.shape_cast %119 : vector<1x1x128xf32> to vector<1x128xf32>
    %121 = arith.subf %120, %85 : vector<1x128xf32>
    %122 = arith.addf %121, %118 : vector<1x128xf32>
    %cst_33 = arith.constant 0.000000e+00 : f32
    %123 = vector.broadcast %cst_33 : f32 to vector<1x128xf32>
    %124 = arith.maximumf %122, %123 : vector<1x128xf32>
    %125 = arith.addf %113, %124 : vector<1x128xf32>
    %cst_34 = arith.constant 3.000000e+00 : f32
    %126 = vector.broadcast %cst_34 : f32 to vector<1x128xf32>
    %127 = arith.subf %27, %126 : vector<1x128xf32>
    %128 = math.absf %127 : vector<1x128xf32>
    %cst_35 = arith.constant 2.500000e-01 : f32
    %129 = vector.broadcast %cst_35 : f32 to vector<1x128xf32>
    %130 = arith.mulf %128, %129 : vector<1x128xf32>
    %131 = vector.extract_strided_slice %0 {offsets = [3, 0, 0], sizes = [1, 1, 128], strides = [1, 1, 1]} : vector<5x1x128xf32> to vector<1x1x128xf32>
    %132 = vector.shape_cast %131 : vector<1x1x128xf32> to vector<1x128xf32>
    %133 = arith.subf %132, %85 : vector<1x128xf32>
    %134 = arith.addf %133, %130 : vector<1x128xf32>
    %cst_36 = arith.constant 0.000000e+00 : f32
    %135 = vector.broadcast %cst_36 : f32 to vector<1x128xf32>
    %136 = arith.maximumf %134, %135 : vector<1x128xf32>
    %137 = arith.addf %125, %136 : vector<1x128xf32>
    %cst_37 = arith.constant 4.000000e+00 : f32
    %138 = vector.broadcast %cst_37 : f32 to vector<1x128xf32>
    %139 = arith.subf %27, %138 : vector<1x128xf32>
    %140 = math.absf %139 : vector<1x128xf32>
    %cst_38 = arith.constant 2.500000e-01 : f32
    %141 = vector.broadcast %cst_38 : f32 to vector<1x128xf32>
    %142 = arith.mulf %140, %141 : vector<1x128xf32>
    %143 = vector.extract_strided_slice %0 {offsets = [4, 0, 0], sizes = [1, 1, 128], strides = [1, 1, 1]} : vector<5x1x128xf32> to vector<1x1x128xf32>
    %144 = vector.shape_cast %143 : vector<1x1x128xf32> to vector<1x128xf32>
    %145 = arith.subf %144, %85 : vector<1x128xf32>
    %146 = arith.addf %145, %142 : vector<1x128xf32>
    %cst_39 = arith.constant 0.000000e+00 : f32
    %147 = vector.broadcast %cst_39 : f32 to vector<1x128xf32>
    %148 = arith.maximumf %146, %147 : vector<1x128xf32>
    %149 = arith.addf %137, %148 : vector<1x128xf32>
    %150 = vector.extract_strided_slice %0 {offsets = [0, 0, 0], sizes = [1, 1, 128], strides = [1, 1, 1]} : vector<5x1x128xf32> to vector<1x1x128xf32>
    %151 = vector.shape_cast %150 : vector<1x1x128xf32> to vector<1x128xf32>
    %152 = arith.subf %151, %85 : vector<1x128xf32>
    %cst_40 = arith.constant 1.000000e+00 : f32
    %153 = vector.broadcast %cst_40 : f32 to vector<1x128xf32>
    %154 = arith.addf %152, %153 : vector<1x128xf32>
    %cst_41 = arith.constant 0.000000e+00 : f32
    %155 = vector.broadcast %cst_41 : f32 to vector<1x128xf32>
    %156 = arith.maximumf %154, %155 : vector<1x128xf32>
    %cst_42 = arith.constant 5.000000e-01 : f32
    %157 = vector.broadcast %cst_42 : f32 to vector<1x128xf32>
    %158 = arith.mulf %157, %156 : vector<1x128xf32>
    %159 = arith.addf %149, %158 : vector<1x128xf32>
    %cst_43 = arith.constant 0.000000e+00 : f32
    %160 = vector.broadcast %cst_43 : f32 to vector<1x128xf32>
    %161 = arith.select %29, %160, %159 : vector<1x128xi1>, vector<1x128xf32>
    %162 = arith.mulf %1, %41 : vector<5x1x128xf32>
    %cst_44 = arith.constant 1.000000e+00 : f32
    %163 = vector.broadcast %cst_44 : f32 to vector<5x1x128xf32>
    %164 = arith.subf %163, %1 : vector<5x1x128xf32>
    %165 = arith.mulf %164, %46 : vector<5x1x128xf32>
    %166 = arith.addf %162, %165 : vector<5x1x128xf32>
    %167 = vector.extract_strided_slice %166 {offsets = [0, 0, 0], sizes = [1, 1, 128], strides = [1, 1, 1]} : vector<5x1x128xf32> to vector<1x1x128xf32>
    %168 = vector.shape_cast %167 : vector<1x1x128xf32> to vector<1x128xf32>
    %169 = vector.extract_strided_slice %166 {offsets = [1, 0, 0], sizes = [1, 1, 128], strides = [1, 1, 1]} : vector<5x1x128xf32> to vector<1x1x128xf32>
    %170 = vector.shape_cast %169 : vector<1x1x128xf32> to vector<1x128xf32>
    %171 = arith.addf %168, %170 : vector<1x128xf32>
    %172 = vector.extract_strided_slice %166 {offsets = [2, 0, 0], sizes = [1, 1, 128], strides = [1, 1, 1]} : vector<5x1x128xf32> to vector<1x1x128xf32>
    %173 = vector.shape_cast %172 : vector<1x1x128xf32> to vector<1x128xf32>
    %174 = arith.addf %171, %173 : vector<1x128xf32>
    %175 = vector.extract_strided_slice %166 {offsets = [3, 0, 0], sizes = [1, 1, 128], strides = [1, 1, 1]} : vector<5x1x128xf32> to vector<1x1x128xf32>
    %176 = vector.shape_cast %175 : vector<1x1x128xf32> to vector<1x128xf32>
    %177 = arith.addf %174, %176 : vector<1x128xf32>
    %178 = vector.extract_strided_slice %166 {offsets = [4, 0, 0], sizes = [1, 1, 128], strides = [1, 1, 1]} : vector<5x1x128xf32> to vector<1x1x128xf32>
    %179 = vector.shape_cast %178 : vector<1x1x128xf32> to vector<1x128xf32>
    %180 = arith.addf %177, %179 : vector<1x128xf32>
    %cst_45 = arith.constant 2.000000e-01 : f32
    %181 = vector.broadcast %cst_45 : f32 to vector<1x128xf32>
    %182 = arith.mulf %180, %181 : vector<1x128xf32>
    %183 = arith.mulf %88, %100 : vector<1x128xf32>
    %184 = vector.extract_strided_slice %46 {offsets = [0, 0, 0], sizes = [1, 1, 128], strides = [1, 1, 1]} : vector<5x1x128xf32> to vector<1x1x128xf32>
    %185 = vector.shape_cast %184 : vector<1x1x128xf32> to vector<1x128xf32>
    %cst_46 = arith.constant 1.500000e+00 : f32
    %186 = vector.broadcast %cst_46 : f32 to vector<1x128xf32>
    %187 = arith.mulf %186, %185 : vector<1x128xf32>
    %188 = arith.addf %183, %187 : vector<1x128xf32>
    %189 = arith.select %29, %182, %188 : vector<1x128xi1>, vector<1x128xf32>
    %cst_47 = arith.constant 0.000000e+00 : f32
    %190 = vector.broadcast %cst_47 : f32 to vector<1x128xf32>
    %191 = arith.subf %190, %189 : vector<1x128xf32>
    %cst_48 = arith.constant 0.699999988 : f32
    %192 = vector.broadcast %cst_48 : f32 to vector<1x128xf32>
    %193 = arith.mulf %192, %161 : vector<1x128xf32>
    %cst_49 = arith.constant 1.300000e+00 : f32
    %194 = vector.broadcast %cst_49 : f32 to vector<1x128xf32>
    %195 = arith.mulf %194, %191 : vector<1x128xf32>
    %196 = arith.addf %193, %195 : vector<1x128xf32>
    %197 = tpu.iota {dimensions = array<i32: 0>} : vector<1x128xi32>
    %198 = tpu.iota {dimensions = array<i32: 1>} : vector<1x128xi32>
    %c128_i32 = arith.constant 128 : i32
    %199 = arith.muli %arg0, %c128_i32 : i32
    %c128_i32_50 = arith.constant 128 : i32
    %200 = vector.broadcast %c128_i32_50 : i32 to vector<1x128xi32>
    %201 = arith.muli %197, %200 : vector<1x128xi32>
    %202 = vector.broadcast %199 : i32 to vector<1x128xi32>
    %203 = arith.addi %202, %201 : vector<1x128xi32>
    %204 = arith.addi %203, %198 : vector<1x128xi32>
    %c8_i32 = arith.constant 8 : i32
    %205 = vector.broadcast %c8_i32 : i32 to vector<1x128xi32>
    %206 = arith.cmpi slt, %204, %205 : vector<1x128xi32>
    %cst_51 = arith.constant 0.000000e+00 : f32
    %207 = vector.broadcast %cst_51 : f32 to vector<1x128xf32>
    %208 = arith.select %206, %196, %207 : vector<1x128xi1>, vector<1x128xf32>
    %209 = vector.shape_cast %208 : vector<1x128xf32> to vector<1x1x128xf32>
    %cst_52 = arith.constant dense<0.000000e+00> : vector<1xf32>
    %210 = vector.multi_reduction <add>, %209, %cst_52 [1, 2] : vector<1x1x128xf32> to vector<1xf32>
    %211 = vector.shape_cast %210 : vector<1xf32> to vector<1x1x1xf32>
    %212 = vector.extract %211[0, 0, 0] : f32 from vector<1x1x1xf32>
    %c0_53 = arith.constant 0 : index
    %c0_54 = arith.constant 0 : index
    %213 = memref.load %arg3[%c0_53, %c0_54] : memref<1x1xf32, #tpu.memory_space<smem>>
    memref.store %212, %arg3[%c0_53, %c0_54] : memref<1x1xf32, #tpu.memory_space<smem>>
    return
  }
  func.func @transform_0(%arg0: i32) -> (i32, i32, i32) {
    %c0_i32 = arith.constant 0 : i32
    %c0_i32_0 = arith.constant 0 : i32
    %c0_i32_1 = arith.constant 0 : i32
    return %c0_i32, %arg0, %c0_i32_0 : i32, i32, i32
  }
  func.func @transform_1(%arg0: i32) -> (i32, i32, i32) {
    %c0_i32 = arith.constant 0 : i32
    %c0_i32_0 = arith.constant 0 : i32
    %c0_i32_1 = arith.constant 0 : i32
    return %c0_i32, %arg0, %c0_i32_0 : i32, i32, i32
  }
  func.func @transform_2(%arg0: i32) -> (i32, i32) {
    %c0_i32 = arith.constant 0 : i32
    %c0_i32_0 = arith.constant 0 : i32
    return %c0_i32, %arg0 : i32, i32
  }
}

</mosaic_0001>

<llo_original>
// kernel: tpu_custom_call.1
$region0: #{tpu_custom_call.1}
  #allocation0 [shape = 'u32[]', space=smem, size = 0x4, offset = 0x4, fixed_abs, tag = 'smem constant byte address 0x4 - core index']
  #allocation1 [shape = 'u32[144,128]{1,0:T(1,128)}', space=vmem, size = 0x12000, scoped, tag = 'internal scratch']
  %s0 = inlined_call_operand.hbm [shape: f32[5,1,128], index: 0, kind: input, shape index: {}]
  %s1 = inlined_call_operand.hbm [shape: f32[5,1,128], index: 1, kind: input, shape index: {}]
  %s2 = inlined_call_operand.hbm [shape: f32[1,1], index: 2, kind: output, shape index: {}]
  %s3 = sld [smem:[#allocation0]]
  $region26: #{tpu_custom_call.1} parent=0
    _
  %s5 = ssub.s32 1, %s3
  %s6 = scalar_select 0, %s5, %s3
  $region1: #{tpu_custom_call.1} parent=0
    #allocation2 [shape = 'u8[2560]{0}', space=vmem, size = 0xc00, scoped, tag = 'input window, operand 0, single buffered']
    #allocation3 [shape = 's32[1]{0}', space=sflag, size = 0x4, scoped, tag = 'scoped memory for tpu_custom_call.1']
    #allocation4 [shape = 's32[1]{0}', space=sflag, size = 0x4, scoped, tag = 'scoped memory for tpu_custom_call.1']
    #allocation5 [shape = 'u8[2560]{0}', space=vmem, size = 0xc00, scoped, tag = 'input window, operand 1, single buffered']
    #allocation6 [shape = 's32[1]{0}', space=sflag, size = 0x4, scoped, tag = 'scoped memory for tpu_custom_call.1']
    #allocation7 [shape = 'u8[512]{0}', space=smem, size = 0x200, scoped, tag = 'output window, operand 0, single buffered']
    %7 = vsyncpa [#allocation3], 0
    %8 = vsyncpa [#allocation6], 0
    %9 = vsyncpa [#allocation4], 0
    // Predicated region
    $region2: #{tpu_custom_call.1} parent=1 // pred_check
      _
    $region3: #{tpu_custom_call.1} parent=1 // pred_check_branch
      %11 = sbr.rel (0) target = $region5
    $region4: #{tpu_custom_call.1} parent=1 // pred_region
      %s13 = ssub.s32 80, 80
      %14 = vsyncadd [#allocation3], %s13
      %s15 = sshll.u32 [#allocation2], 4
      %s16 = int_to_ptr.vmem [resolvable:$true] %s15
      %21 = dma.hbm_to_vmem [thread:$0]  %s0, 80, %s16, [#allocation3], 16, 16, 1
    $region5: #{tpu_custom_call.1} parent=1 // pred_fallthru
      _
    // Predicated region
    $region6: #{tpu_custom_call.1} parent=1 // pred_check
      _
    $region7: #{tpu_custom_call.1} parent=1 // pred_check_branch
      %23 = sbr.rel (0) target = $region9
    $region8: #{tpu_custom_call.1} parent=1 // pred_region
      %s25 = ssub.s32 80, 80
      %26 = vsyncadd [#allocation6], %s25
      %s27 = sshll.u32 [#allocation5], 4
      %s28 = int_to_ptr.vmem [resolvable:$true] %s27
      %33 = dma.hbm_to_vmem [thread:$0]  %s1, 80, %s28, [#allocation6], 16, 16, 1
    $region9: #{tpu_custom_call.1} parent=1 // pred_fallthru
      _
    // Predicated region
    $region10: #{tpu_custom_call.1} parent=1 // pred_check
      _
    $region11: #{tpu_custom_call.1} parent=1 // pred_check_branch
      %35 = sbr.rel (0) target = $region13
    $region12: #{tpu_custom_call.1} parent=1 // pred_region
      %36 = dma.done [#allocation3], 80
    $region13: #{tpu_custom_call.1} parent=1 // pred_fallthru
      _
    // Predicated region
    $region14: #{tpu_custom_call.1} parent=1 // pred_check
      _
    $region15: #{tpu_custom_call.1} parent=1 // pred_check_branch
      %38 = sbr.rel (0) target = $region17
    $region16: #{tpu_custom_call.1} parent=1 // pred_region
      %39 = dma.done [#allocation6], 80
    $region17: #{tpu_custom_call.1} parent=1 // pred_fallthru
      _
    %v40 = vld [vmem:[#allocation2] sm:$0x1]
    %v41 = vld [vmem:[#allocation2 + $0x1] sm:$0x1]
    %v42 = vld [vmem:[#allocation2 + $0x2] sm:$0x1]
    %v43 = vld [vmem:[#allocation2 + $0x3] sm:$0x1]
    %v44 = vld [vmem:[#allocation2 + $0x4] sm:$0x1]
    %v45 = vld [vmem:[#allocation5] sm:$0x1]
    %v46 = vld [vmem:[#allocation5 + $0x1] sm:$0x1]
    %v47 = vld [vmem:[#allocation5 + $0x2] sm:$0x1]
    %v48 = vld [vmem:[#allocation5 + $0x3] sm:$0x1]
    %v49 = vld [vmem:[#allocation5 + $0x4] sm:$0x1]
    %vm50 = vcmp.gt.f32.partialorder %v46, %v45
    %v51 = vsel %vm50, %v46, %v45
    %v52 = vsel %vm50, 1.0, 0.0
    %vm53 = vcmp.gt.f32.partialorder %v47, %v51
    %v54 = vsel %vm53, %v47, %v51
    %v55 = vsel %vm53, 2.0, %v52
    %vm56 = vcmp.gt.f32.partialorder %v48, %v54
    %v57 = vsel %vm56, %v48, %v54
    %v58 = vsel %vm56, 3.0, %v55
    %vm59 = vcmp.gt.f32.partialorder %v49, %v57
    %v60 = vsel %vm59, 4.0, %v58
    %vm61 = vcmp.eq.f32.partialorder %v60, 0.0
    %v62 = vmin.f32 %v40, 0.0
    %v63 = vmin.f32 %v41, 0.0
    %v64 = vmin.f32 %v42, 0.0
    %v65 = vmin.f32 %v43, 0.0
    %v66 = vmin.f32 %v44, 0.0
    %v67 = vand.u32 2147483647, %v40
    %v68 = vand.u32 2147483647, %v41
    %v69 = vand.u32 2147483647, %v42
    %v70 = vand.u32 2147483647, %v43
    %v71 = vand.u32 2147483647, %v44
    %v72 = vsub.f32 0.0, %v67
    %v73 = vsub.f32 0.0, %v68
    %v74 = vsub.f32 0.0, %v69
    %v75 = vsub.f32 0.0, %v70
    %v76 = vsub.f32 0.0, %v71
    %v77 = vmul.f32 %v72, 1.442695
    %v78 = vpow.pop %v77
    %v79 = vmul.f32 %v73, 1.442695
    %v80 = vpow.pop %v79
    %v81 = vmul.f32 %v74, 1.442695
    %v82 = vpow.pop %v81
    %v83 = vmul.f32 %v75, 1.442695
    %v84 = vpow.pop %v83
    %v85 = vmul.f32 %v76, 1.442695
    %v86 = vpow.pop %v85
    %v87 = vadd.f32 %v78, 1.0
    %v88 = vlog2.pop %v87
    %v89 = vmul.f32 %v88, 0.6931472
    %v90 = vmul.f32 -0.5, %v78
    %v91 = vadd.f32 %v90, 1.0
    %v92 = vmul.f32 %v91, %v78
    %v93 = vand.u32 2147483647, %v78
    %vm94 = vcmp.lt.f32.partialorder %v93, 0.0004427343
    %v95 = vsel %vm94, %v92, %v89
    %v96 = vadd.f32 %v80, 1.0
    %v97 = vlog2.pop %v96
    %v98 = vmul.f32 %v97, 0.6931472
    %v99 = vmul.f32 -0.5, %v80
    %v100 = vadd.f32 %v99, 1.0
    %v101 = vmul.f32 %v100, %v80
    %v102 = vand.u32 2147483647, %v80
    %vm103 = vcmp.lt.f32.partialorder %v102, 0.0004427343
    %v104 = vsel %vm103, %v101, %v98
    %v105 = vadd.f32 %v82, 1.0
    %v106 = vlog2.pop %v105
    %v107 = vmul.f32 %v106, 0.6931472
    %v108 = vmul.f32 -0.5, %v82
    %v109 = vadd.f32 %v108, 1.0
    %v110 = vmul.f32 %v109, %v82
    %v111 = vand.u32 2147483647, %v82
    %vm112 = vcmp.lt.f32.partialorder %v111, 0.0004427343
    %v113 = vsel %vm112, %v110, %v107
    %v114 = vadd.f32 %v84, 1.0
    %v115 = vlog2.pop %v114
    %v116 = vmul.f32 %v115, 0.6931472
    %v117 = vmul.f32 -0.5, %v84
    %v118 = vadd.f32 %v117, 1.0
    %v119 = vmul.f32 %v118, %v84
    %v120 = vand.u32 2147483647, %v84
    %vm121 = vcmp.lt.f32.partialorder %v120, 0.0004427343
    %v122 = vsel %vm121, %v119, %v116
    %v123 = vadd.f32 %v86, 1.0
    %v124 = vlog2.pop %v123
    %v125 = vmul.f32 %v124, 0.6931472
    %v126 = vmul.f32 -0.5, %v86
    %v127 = vadd.f32 %v126, 1.0
    %v128 = vmul.f32 %v127, %v86
    %v129 = vand.u32 2147483647, %v86
    %vm130 = vcmp.lt.f32.partialorder %v129, 0.0004427343
    %v131 = vsel %vm130, %v128, %v125
    %v132 = vsub.f32 %v62, %v95
    %v133 = vsub.f32 %v63, %v104
    %v134 = vsub.f32 %v64, %v113
    %v135 = vsub.f32 %v65, %v122
    %v136 = vsub.f32 %v66, %v131
    %v137 = vmax.f32 %v132, -16.118095
    %v138 = vmax.f32 %v133, -16.118095
    %v139 = vmax.f32 %v134, -16.118095
    %v140 = vmax.f32 %v135, -16.118095
    %v141 = vmax.f32 %v136, -16.118095
    %v142 = vmin.f32 %v137, -1.0000001e-07
    %v143 = vmin.f32 %v138, -1.0000001e-07
    %v144 = vmin.f32 %v139, -1.0000001e-07
    %v145 = vmin.f32 %v140, -1.0000001e-07
    %v146 = vmin.f32 %v141, -1.0000001e-07
    %v147 = vsub.f32 %v132, %v40
    %v148 = vsub.f32 %v133, %v41
    %v149 = vsub.f32 %v134, %v42
    %v150 = vsub.f32 %v135, %v43
    %v151 = vsub.f32 %v136, %v44
    %v152 = vmax.f32 %v147, -16.118095
    %v153 = vmax.f32 %v148, -16.118095
    %v154 = vmax.f32 %v149, -16.118095
    %v155 = vmax.f32 %v150, -16.118095
    %v156 = vmax.f32 %v151, -16.118095
    %v157 = vmin.f32 %v152, -1.0000001e-07
    %v158 = vmin.f32 %v153, -1.0000001e-07
    %v159 = vmin.f32 %v154, -1.0000001e-07
    %v160 = vmin.f32 %v155, -1.0000001e-07
    %v161 = vmin.f32 %v156, -1.0000001e-07
    %v162 = vsel %vm61, %v40, 0.0
    %v163 = vsel %vm61, %v45, 0.0
    %vm164 = vcmp.eq.f32.partialorder %v60, 1.0
    %v165 = vsel %vm164, %v41, %v162
    %v166 = vsel %vm164, %v46, %v163
    %vm167 = vcmp.eq.f32.partialorder %v60, 2.0
    %v168 = vsel %vm167, %v42, %v165
    %v169 = vsel %vm167, %v47, %v166
    %vm170 = vcmp.eq.f32.partialorder %v60, 3.0
    %v171 = vsel %vm170, %v43, %v168
    %v172 = vsel %vm170, %v48, %v169
    %vm173 = vcmp.eq.f32.partialorder %v60, 4.0
    %v174 = vsel %vm173, %v44, %v171
    %v175 = vsel %vm173, %v49, %v172
    %v176 = vmin.f32 %v174, 0.0
    %v177 = vand.u32 2147483647, %v174
    %v178 = vsub.f32 0.0, %v177
    %v179 = vmul.f32 %v178, 1.442695
    %v180 = vpow.pop %v179
    %v181 = vadd.f32 %v180, 1.0
    %v182 = vlog2.pop %v181
    %v183 = vmul.f32 %v182, 0.6931472
    %v184 = vmul.f32 -0.5, %v180
    %v185 = vadd.f32 %v184, 1.0
    %v186 = vmul.f32 %v185, %v180
    %v187 = vand.u32 2147483647, %v180
    %vm188 = vcmp.lt.f32.partialorder %v187, 0.0004427343
    %v189 = vsel %vm188, %v186, %v183
    %v190 = vsub.f32 %v176, %v189
    %v191 = vmax.f32 %v190, -16.118095
    %v192 = vmin.f32 %v191, -1.0000001e-07
    %v193 = vsub.f32 %v60, 1.0
    %v194 = vand.u32 2147483647, %v193
    %v195 = vmul.f32 %v194, 0.25
    %v196 = vsub.f32 %v41, %v174
    %v197 = vadd.f32 %v196, %v195
    %v198 = vmax.f32 %v197, 0.0
    %v199 = vadd.f32 %v198, 0.0
    %v200 = vsub.f32 %v60, 2.0
    %v201 = vand.u32 2147483647, %v200
    %v202 = vmul.f32 %v201, 0.25
    %v203 = vsub.f32 %v42, %v174
    %v204 = vadd.f32 %v203, %v202
    %v205 = vmax.f32 %v204, 0.0
    %v206 = vadd.f32 %v199, %v205
    %v207 = vsub.f32 %v60, 3.0
    %v208 = vand.u32 2147483647, %v207
    %v209 = vmul.f32 %v208, 0.25
    %v210 = vsub.f32 %v43, %v174
    %v211 = vadd.f32 %v210, %v209
    %v212 = vmax.f32 %v211, 0.0
    %v213 = vadd.f32 %v206, %v212
    %v214 = vsub.f32 %v60, 4.0
    %v215 = vand.u32 2147483647, %v214
    %v216 = vmul.f32 %v215, 0.25
    %v217 = vsub.f32 %v44, %v174
    %v218 = vadd.f32 %v217, %v216
    %v219 = vmax.f32 %v218, 0.0
    %v220 = vadd.f32 %v213, %v219
    %v221 = vsub.f32 %v40, %v174
    %v222 = vadd.f32 %v221, 1.0
    %v223 = vmax.f32 %v222, 0.0
    %v224 = vmul.f32 %v223, 0.5
    %v225 = vadd.f32 %v220, %v224
    %v226 = vsel %vm61, 0.0, %v225
    %v227 = vmul.f32 %v45, %v142
    %v228 = vmul.f32 %v46, %v143
    %v229 = vmul.f32 %v47, %v144
    %v230 = vmul.f32 %v48, %v145
    %v231 = vmul.f32 %v49, %v146
    %v232 = vsub.f32 1.0, %v45
    %v233 = vsub.f32 1.0, %v46
    %v234 = vsub.f32 1.0, %v47
    %v235 = vsub.f32 1.0, %v48
    %v236 = vsub.f32 1.0, %v49
    %v237 = vmul.f32 %v232, %v157
    %v238 = vmul.f32 %v233, %v158
    %v239 = vmul.f32 %v234, %v159
    %v240 = vmul.f32 %v235, %v160
    %v241 = vmul.f32 %v236, %v161
    %v242 = vadd.f32 %v227, %v237
    %v243 = vadd.f32 %v228, %v238
    %v244 = vadd.f32 %v229, %v239
    %v245 = vadd.f32 %v230, %v240
    %v246 = vadd.f32 %v231, %v241
    %v247 = vadd.f32 %v242, %v243
    %v248 = vadd.f32 %v247, %v244
    %v249 = vadd.f32 %v248, %v245
    %v250 = vadd.f32 %v249, %v246
    %v251 = vmul.f32 %v250, 0.2
    %v252 = vmul.f32 %v175, %v192
    %v253 = vmul.f32 %v157, 1.5
    %v254 = vadd.f32 %v252, %v253
    %v255 = vsel %vm61, %v251, %v254
    %v256 = vsub.f32 0.0, %v255
    %v257 = vmul.f32 %v226, 0.7
    %v258 = vmul.f32 %v256, 1.3
    %v259 = vadd.f32 %v257, %v258
    %v260 = vlaneseq
    %v261 = vshrl.u32 %v260, 7
    %v262 = vlaneseq
    %v263 = vand.u32 %v262, 127
    %s264 = smul.u32 0, 128
    %v265 = vmul.u32 %v261, 128
    %v266 = vstv %s264
    %v267 = vadd.s32 %v266, %v265
    %v268 = vadd.s32 %v267, %v263
    %vm269 = vcmp.lt.s32.totalorder %v268, 8
    %v270 = vsel %vm269, %v259, 0.0
    %vm271 = vcmask 1040384
    %v272 = vsel %vm271, %v270, 0.0
    %273 = vadd.xlane.f32.xlu0 %v272
    %v274 = vpop.xlane.xlu0 %273
    %v275 = vrot.slane %v274, 4
    %v276 = vadd.f32 %v274, %v275
    %v277 = vrot.slane %v276, 2
    %v278 = vadd.f32 %v276, %v277
    %v279 = vrot.slane %v278, 1
    %v280 = vadd.f32 %v278, %v279
    %s281 = vtos %v280
    %s282 = scalar_lea.smem [#allocation7], 0
    %283 = sst [smem:[%s282]] %s281
    // Predicated region
    $region18: #{tpu_custom_call.1} parent=1 // pred_check
      _
    $region19: #{tpu_custom_call.1} parent=1 // pred_check_branch
      %285 = sbr.rel (0) target = $region21
    $region20: #{tpu_custom_call.1} parent=1 // pred_region
      %s287 = ssub.s32 16, 16
      %288 = vsyncadd [#allocation4], %s287
      %291 = dma.smem_to_hbm [#allocation7], 16, %s2, [#allocation4]
    $region21: #{tpu_custom_call.1} parent=1 // pred_fallthru
      _
    // Predicated region
    $region22: #{tpu_custom_call.1} parent=1 // pred_check
      _
    $region23: #{tpu_custom_call.1} parent=1 // pred_check_branch
      %293 = sbr.rel (0) target = $region25
    $region24: #{tpu_custom_call.1} parent=1 // pred_region
      %294 = dma.done [#allocation4], 16
    $region25: #{tpu_custom_call.1} parent=1 // pred_fallthru
      _
    %295 = sfence
    %296 = vsyncpa [#allocation3], 1
    %297 = vsyncpa [#allocation6], 1
    %298 = vsyncpa [#allocation4], 1

</llo_original>
